<compile_context>
chip_gen: v7x
topology: tpu7x:2x2x1
jax: 0.10.0
libtpu: 0.0.40
codegen_flags: <defaults>
</compile_context>

<pallas_src>
import functools

import jax
import jax.numpy as jnp
from jax.experimental import pallas as pl
from jax.experimental.pallas import tpu as pltpu

_EPS = 1e-6          # nn.PairwiseDistance default eps (added to the difference)
_LANE = 128


def _nsloss_partial_kernel(h_ref, o_ref, acc_ref, *, d, block_d, steps):
    """Accumulate per-row partial sums of (h - o + eps)^2 over D blocks."""
    c = pl.program_id(0)          # TensorCore split axis ("parallel")
    i = pl.program_id(1)          # D-block reduction axis ("arbitrary")

    @pl.when(i == 0)
    def _init():
        acc_ref[...] = jnp.zeros_like(acc_ref)

    h = h_ref[...].astype(jnp.float32)
    o = o_ref[...].astype(jnp.float32)
    diff = h - o + _EPS
    prod = diff * diff                                        # (n, block_d) f32

    if d % block_d != 0:
        # Mask the clipped tail block (no wrapper padding -> no eps correction).
        col0 = (c * steps + i) * block_d
        col = jax.lax.broadcasted_iota(jnp.int32, prod.shape, dimension=1) + col0
        prod = jnp.where(col < d, prod, 0.0)

    if block_d % _LANE == 0:
        # Lane-wide accumulation: tile-aligned 128-lane chunk adds (VALU only).
        part = prod[:, 0:_LANE]
        for k in range(1, block_d // _LANE):
            part = part + prod[:, k * _LANE:(k + 1) * _LANE]  # (n, 128)
    else:
        # Single small block over full D (block_d == d, grid == (1, 1)).
        part = jnp.sum(prod, axis=-1, keepdims=True)          # (n, 1)

    acc_ref[...] += part[None, :, :]


def _cdiv(a, b):
    return -(-a // b)


def _budgets():
    """(per-input per-buffer block budget bytes, vmem_limit_bytes), generation-aware."""
    block_budget = 2 * 1024 * 1024        # safe for v7x (64 MiB physical VMEM)
    vmem_limit = 32 * 1024 * 1024
    try:
        cap = pltpu.get_tpu_info().vmem_capacity_bytes
        if cap >= 96 * 1024 * 1024:       # v5e / v6e: 128 MiB physical VMEM
            block_budget = 4 * 1024 * 1024
            vmem_limit = 64 * 1024 * 1024
    except Exception:
        pass                               # interpret mode / query unavailable
    return block_budget, vmem_limit


def nsloss(hidden, output, temp=5.0, *, block_cols=None):
    """Pallas TPU implementation of NSLoss.forward. Returns a scalar float32."""
    assert hidden.shape == output.shape and hidden.ndim == 2
    n, d = hidden.shape
    assert n >= 2, "NSLoss needs at least one negative sample (rows >= 1)"

    itemsize = hidden.dtype.itemsize
    block_budget, vmem_limit = _budgets()
    if block_cols is None:
        # Size blocks by the input itemsize (bf16 doubles columns at equal VMEM),
        # but cap the f32 intermediates at 2x the per-buffer budget.
        block_cols = min(block_budget // (itemsize * n),
                         (2 * block_budget) // (4 * n))
        block_cols = max(block_cols, _LANE)

    if d <= block_cols:
        block_d = d                        # single block over full D, no masking
        col_blocks = 1
    else:
        block_d = max(_LANE, (block_cols // _LANE) * _LANE)
        col_blocks = _cdiv(d, block_d)

    # Split the D-block range across the two v7x TensorCores when evenly possible
    # (runs as a cheap serial loop on single-core v5e/v6e).
    n_split = 2 if (col_blocks >= 2 and col_blocks % 2 == 0) else 1
    steps = col_blocks // n_split
    acc_lanes = _LANE if block_d % _LANE == 0 else 1

    kernel = functools.partial(_nsloss_partial_kernel,
                               d=d, block_d=block_d, steps=steps)

    partials = pl.pallas_call(
        kernel,
        out_shape=jax.ShapeDtypeStruct((n_split, n, acc_lanes), jnp.float32),
        grid=(n_split, steps),
        in_specs=[
            pl.BlockSpec((n, block_d), lambda c, i: (0, c * steps + i)),
            pl.BlockSpec((n, block_d), lambda c, i: (0, c * steps + i)),
        ],
        out_specs=pl.BlockSpec((1, n, acc_lanes), lambda c, i: (c, 0, 0)),
        compiler_params=pltpu.CompilerParams(
            dimension_semantics=("parallel", "arbitrary"),
            vmem_limit_bytes=vmem_limit,
        ),
        cost_estimate=pl.CostEstimate(
            flops=4 * n * d,
            transcendentals=0,
            bytes_accessed=2 * n * d * itemsize + n_split * n * acc_lanes * 4,
        ),
    )(hidden, output)

    # O(N) epilogue: finish per-row sums, then the (stabilized) log-sum-exp over
    # the negatives. Mathematically identical to the torch formula.
    sq = jnp.sum(partials, axis=(0, 2))          # (n,)  ||h_i - o_i + eps||^2
    dist = temp * sq
    pos = dist[0]
    neg = dist[1:]
    m = jnp.min(neg)
    negs = jnp.log(jnp.sum(jnp.exp(m - neg))) - m   # log sum_i exp(-neg_i)
    return pos + negs                               # == -(pos_torch - negs_torch)


def _nsloss_ref(hidden, output, temp=5.0):
    """Pure-JAX reference mirroring the PyTorch module verbatim (unstabilized)."""
    h = hidden.astype(jnp.float32)
    o = output.astype(jnp.float32)
    dd = jnp.sqrt(jnp.sum((h - o + _EPS) ** 2, axis=-1))
    dist = temp * dd ** 2
    pos = -dist[0]
    negs = jnp.log(jnp.sum(jnp.exp(-dist)[1:]))
    return -(pos - negs)


if __name__ == "__main__":
    key = jax.random.PRNGKey(0)
    k1, k2 = jax.random.split(key)

    # Case 1: typical small use — 8 samples (row 0 positive, 7 negatives), dim 32,
    # default temp. Inputs scaled so exp(-dist) stays far from fp32 underflow
    # (the reference uses the module's unstabilized formula).
    N, D = 8, 32
    hidden = 0.1 * jax.random.normal(k1, (N, D), dtype=jnp.float32)
    output = 0.1 * jax.random.normal(k2, (N, D), dtype=jnp.float32)
    loss = nsloss(hidden, output, temp=5.0)
    jax.block_until_ready(loss)
    ref = _nsloss_ref(hidden, output, temp=5.0)
    assert jnp.allclose(loss, ref, rtol=1e-4, atol=1e-4), (loss, ref)

    # Case 2: D not a multiple of 128 with a forced small block size — exercises
    # the tiled D reduction, the 2-way core split and the in-kernel tail masking.
    D2 = 1000
    h2 = jax.random.normal(k1, (N, D2), dtype=jnp.float32)
    o2 = jax.random.normal(k2, (N, D2), dtype=jnp.float32)
    loss2 = nsloss(h2, o2, temp=1e-3, block_cols=256)
    jax.block_until_ready(loss2)
    ref2 = _nsloss_ref(h2, o2, temp=1e-3)
    assert jnp.allclose(loss2, ref2, rtol=1e-4, atol=1e-4), (loss2, ref2)

    print("KERNEL_OK")
</pallas_src>

<mosaic_0001>
module attributes {stable_mosaic.version = 11 : i64} {
  func.func @_nsloss_partial_kernel(%arg0: i32, %arg1: i32, %arg2: memref<8x32xf32, #tpu.memory_space<vmem>>, %arg3: memref<8x32xf32, #tpu.memory_space<vmem>>, %arg4: memref<1x8x1xf32, #tpu.memory_space<vmem>>) attributes {dimension_semantics = [#tpu.dimension_semantics<parallel>, #tpu.dimension_semantics<arbitrary>], iteration_bounds = array<i64: 1, 1>, scalar_prefetch = 0 : i64, scratch_operands = 0 : i64, tpu.core_type = #tpu.core_type<tc>, window_params = [{transform_indices = @transform_0, window_bounds = array<i64: 8, 32>}, {transform_indices = @transform_1, window_bounds = array<i64: 8, 32>}, {transform_indices = @transform_2, window_bounds = array<i64: 1, 8, 1>}]} {
    %c0_i32 = arith.constant 0 : i32
    %0 = arith.cmpi eq, %arg1, %c0_i32 : i32
    %1 = arith.extui %0 : i1 to i32
    %c0_i32_0 = arith.constant 0 : i32
    %2 = arith.cmpi ne, %1, %c0_i32_0 : i32
    scf.if %2 {
      %cst_11 = arith.constant 0.000000e+00 : f32
      %15 = vector.broadcast %cst_11 : f32 to vector<1x8x1xf32>
      %c0_12 = arith.constant 0 : index
      %c0_13 = arith.constant 0 : index
      %c0_14 = arith.constant 0 : index
      %16 = vector.load %arg4[%c0_12, %c0_13, %c0_14] : memref<1x8x1xf32, #tpu.memory_space<vmem>>, vector<1x8x1xf32>
      tpu.vector_store %arg4[%c0_12, %c0_13, %c0_14], %15 {strides = array<i32>} : memref<1x8x1xf32, #tpu.memory_space<vmem>>, vector<1x8x1xf32>,
    } else {
    }
    %c0 = arith.constant 0 : index
    %c0_1 = arith.constant 0 : index
    %3 = vector.load %arg2[%c0, %c0_1] : memref<8x32xf32, #tpu.memory_space<vmem>>, vector<8x32xf32>
    %c0_2 = arith.constant 0 : index
    %c0_3 = arith.constant 0 : index
    %4 = vector.load %arg3[%c0_2, %c0_3] : memref<8x32xf32, #tpu.memory_space<vmem>>, vector<8x32xf32>
    %5 = arith.subf %3, %4 : vector<8x32xf32>
    %cst = arith.constant 9.99999997E-7 : f32
    %6 = vector.broadcast %cst : f32 to vector<8x32xf32>
    %7 = arith.addf %5, %6 : vector<8x32xf32>
    %8 = arith.mulf %7, %7 : vector<8x32xf32>
    %cst_4 = arith.constant dense<0.000000e+00> : vector<8xf32>
    %9 = vector.multi_reduction <add>, %8, %cst_4 [1] : vector<8x32xf32> to vector<8xf32>
    %10 = vector.shape_cast %9 : vector<8xf32> to vector<8x1xf32>
    %c0_5 = arith.constant 0 : index
    %c0_6 = arith.constant 0 : index
    %c0_7 = arith.constant 0 : index
    %11 = vector.load %arg4[%c0_5, %c0_6, %c0_7] : memref<1x8x1xf32, #tpu.memory_space<vmem>>, vector<1x8x1xf32>
    %12 = vector.shape_cast %10 : vector<8x1xf32> to vector<1x8x1xf32>
    %13 = arith.addf %11, %12 : vector<1x8x1xf32>
    %c0_8 = arith.constant 0 : index
    %c0_9 = arith.constant 0 : index
    %c0_10 = arith.constant 0 : index
    %14 = vector.load %arg4[%c0_8, %c0_9, %c0_10] : memref<1x8x1xf32, #tpu.memory_space<vmem>>, vector<1x8x1xf32>
    tpu.vector_store %arg4[%c0_8, %c0_9, %c0_10], %13 {strides = array<i32>} : memref<1x8x1xf32, #tpu.memory_space<vmem>>, vector<1x8x1xf32>,
    return
  }
  func.func @transform_0(%arg0: i32, %arg1: i32) -> (i32, i32) {
    %c1_i32 = arith.constant 1 : i32
    %0 = arith.muli %arg0, %c1_i32 : i32
    %1 = arith.addi %0, %arg1 : i32
    %c0_i32 = arith.constant 0 : i32
    %c0_i32_0 = arith.constant 0 : i32
    return %c0_i32, %1 : i32, i32
  }
  func.func @transform_1(%arg0: i32, %arg1: i32) -> (i32, i32) {
    %c1_i32 = arith.constant 1 : i32
    %0 = arith.muli %arg0, %c1_i32 : i32
    %1 = arith.addi %0, %arg1 : i32
    %c0_i32 = arith.constant 0 : i32
    %c0_i32_0 = arith.constant 0 : i32
    return %c0_i32, %1 : i32, i32
  }
  func.func @transform_2(%arg0: i32, %arg1: i32) -> (i32, i32, i32) {
    %c0_i32 = arith.constant 0 : i32
    %c0_i32_0 = arith.constant 0 : i32
    %c0_i32_1 = arith.constant 0 : i32
    return %arg0, %c0_i32, %c0_i32_0 : i32, i32, i32
  }
}

</mosaic_0001>

<llo_original>
// kernel: tpu_custom_call.1
$region0: #{tpu_custom_call.1}
  #allocation0 [shape = 'u32[]', space=smem, size = 0x4, offset = 0x4, fixed_abs, tag = 'smem constant byte address 0x4 - core index']
  #allocation1 [shape = 'u32[144,128]{1,0:T(1,128)}', space=vmem, size = 0x12000, scoped, tag = 'internal scratch']
  %s0 = inlined_call_operand.hbm [shape: f32[8,32], index: 0, kind: input, shape index: {}]
  %s1 = inlined_call_operand.hbm [shape: f32[8,32], index: 1, kind: input, shape index: {}]
  %s2 = inlined_call_operand.vmem [shape: f32[1,8,1], index: 2, kind: output, shape index: {}]
  %s3 = sld [smem:[#allocation0]]
  $region30: #{tpu_custom_call.1} parent=0
    _
  %s5 = ssub.s32 1, %s3
  %s6 = scalar_select 0, %s5, %s3
  $region1: #{tpu_custom_call.1} parent=0
    #allocation2 [shape = 'u8[4096]{0}', space=vmem, size = 0x1000, scoped, tag = 'input window, operand 0, single buffered']
    #allocation3 [shape = 's32[1]{0}', space=sflag, size = 0x4, scoped, tag = 'scoped memory for tpu_custom_call.1']
    #allocation4 [shape = 'u8[4096]{0}', space=vmem, size = 0x1000, scoped, tag = 'input window, operand 1, single buffered']
    #allocation5 [shape = 's32[1]{0}', space=sflag, size = 0x4, scoped, tag = 'scoped memory for tpu_custom_call.1']
    %7 = vsyncpa [#allocation3], 0
    %8 = vsyncpa [#allocation5], 0
    // Predicated region
    $region2: #{tpu_custom_call.1} parent=1 // pred_check
      _
    $region3: #{tpu_custom_call.1} parent=1 // pred_check_branch
      %10 = sbr.rel (0) target = $region5
    $region4: #{tpu_custom_call.1} parent=1 // pred_region
      %s11 = sadd.s32 0, 0
      %s13 = ssub.s32 128, 128
      %14 = vsyncadd [#allocation3], %s13
      %s15 = smul.addr %s11, 128
      %s16 = scalar_lea.hbm %s0, %s15
      %s18 = sshll.u32 [#allocation2], 4
      %s19 = int_to_ptr.vmem [resolvable:$true] %s18
      %21 = dma.hbm_to_vmem [thread:$0]  %s16, 128, %s19, [#allocation3]
    $region5: #{tpu_custom_call.1} parent=1 // pred_fallthru
      _
    // Predicated region
    $region6: #{tpu_custom_call.1} parent=1 // pred_check
      _
    $region7: #{tpu_custom_call.1} parent=1 // pred_check_branch
      %23 = sbr.rel (0) target = $region9
    $region8: #{tpu_custom_call.1} parent=1 // pred_region
      %s24 = sadd.s32 0, 0
      %s26 = ssub.s32 128, 128
      %27 = vsyncadd [#allocation5], %s26
      %s28 = smul.addr %s24, 128
      %s29 = scalar_lea.hbm %s1, %s28
      %s31 = sshll.u32 [#allocation4], 4
      %s32 = int_to_ptr.vmem [resolvable:$true] %s31
      %34 = dma.hbm_to_vmem [thread:$0]  %s29, 128, %s32, [#allocation5]
    $region9: #{tpu_custom_call.1} parent=1 // pred_fallthru
      _
    // Predicated region
    $region10: #{tpu_custom_call.1} parent=1 // pred_check
      _
    $region11: #{tpu_custom_call.1} parent=1 // pred_check_branch
      %36 = sbr.rel (0) target = $region13
    $region12: #{tpu_custom_call.1} parent=1 // pred_region
      %37 = dma.done [#allocation3], 128
    $region13: #{tpu_custom_call.1} parent=1 // pred_fallthru
      _
    // Predicated region
    $region14: #{tpu_custom_call.1} parent=1 // pred_check
      _
    $region15: #{tpu_custom_call.1} parent=1 // pred_check_branch
      %39 = sbr.rel (0) target = $region17
    $region16: #{tpu_custom_call.1} parent=1 // pred_region
      %40 = dma.done [#allocation5], 128
    $region17: #{tpu_custom_call.1} parent=1 // pred_fallthru
      _
    %s41 = sadd.s32 0, 0
    %s42 = sadd.s32 0, 0
    %p43 = scmp.eq.s32.totalorder 0, 0
    // Predicated region
    $region18: #{tpu_custom_call.1} parent=1 // pred_check
      %p44 = pneg %p43
    $region19: #{tpu_custom_call.1} parent=1 // pred_check_branch
      %46 = sbr.rel (%p44) target = $region21
    $region20: #{tpu_custom_call.1} parent=1 // pred_region
      %vm47 = vcmask 7168
      %48 = vst.msk [vmem:[%s2] sm:$0xff] %vm47, 0.0
    $region21: #{tpu_custom_call.1} parent=1 // pred_fallthru
      _
    %v49 = vld [vmem:[#allocation2] sm:$0xff]
    %v50 = vld [vmem:[#allocation4] sm:$0xff]
    %v51 = vsub.f32 %v49, %v50
    %v52 = vadd.f32 %v51, 1e-06
    %v53 = vmul.f32 %v52, %v52
    %vm54 = vcmask 261120
    %v55 = vsel %vm54, %v53, 0.0
    %56 = vadd.xlane.f32.xlu0 %v55
    %v57 = vpop.xlane.xlu0 %56
    %v58 = vld [vmem:[%s2] sm:$0xff]
    %v59 = vadd.f32 %v58, %v57
    %vm60 = vcmask 7168
    %61 = vst.msk [vmem:[%s2] sm:$0xff] %vm60, %v59
    // Predicated region
    $region22: #{tpu_custom_call.1} parent=1 // pred_check
      _
    $region23: #{tpu_custom_call.1} parent=1 // pred_check_branch
      %63 = sbr.rel (0) target = $region25
    $region24: #{tpu_custom_call.1} parent=1 // pred_region
      _
    $region25: #{tpu_custom_call.1} parent=1 // pred_fallthru
      _
    // Predicated region
    $region26: #{tpu_custom_call.1} parent=1 // pred_check
      _
    $region27: #{tpu_custom_call.1} parent=1 // pred_check_branch
      %65 = sbr.rel (0) target = $region29
    $region28: #{tpu_custom_call.1} parent=1 // pred_region
      _
    $region29: #{tpu_custom_call.1} parent=1 // pred_fallthru
      _
    %66 = vsyncpa [#allocation3], 1
    %67 = vsyncpa [#allocation5], 1

</llo_original>
